<compile_context>
chip_gen: v7x
topology: tpu7x:2x2x1
jax: 0.10.0
libtpu: 0.0.40
codegen_flags: <defaults>
</compile_context>

<pallas_src>
import functools

import jax
import jax.numpy as jnp
from jax import lax
from jax.experimental import pallas as pl
from jax.experimental.pallas import tpu as pltpu

LANE = 128


def _round_up(x: int, m: int) -> int:
    return ((x + m - 1) // m) * m


def _tpu_vmem_budget_and_cap():
    """(vmem_limit_bytes, lane-tile cap).  Conservative default fits v7x's 64 MiB
    physical VMEM; v5e/v6e (128 MiB physical) get a bigger scoped budget + tiles."""
    kind = ""
    try:
        kind = jax.devices()[0].device_kind.lower()
    except Exception:
        pass
    if any(tag in kind for tag in ("v5 lite", "v5e", "v6 lite", "v6e", "trillium")):
        return 64 * 1024 * 1024, 1024
    return 32 * 1024 * 1024, 512


def _pick_tile(padded: int, cap: int, bytes_per_col: int, budget: int) -> int:
    """Largest multiple of 128 dividing `padded` that fits `budget` and is <= cap.
    If the cap would force tiny 128-wide tiles (padded = 640/896 style), accept a
    single full-width tile up to 2*cap instead (keeps DMAs lane-dense)."""
    cands = [t for t in range(padded, 0, -LANE)
             if padded % t == 0 and bytes_per_col * t <= budget]
    if not cands:
        return LANE
    best = None
    for t in cands:
        if t <= cap:
            best = t
            break
    if best is None:
        return cands[-1]
    wider = [t for t in cands if cap < t <= 2 * cap]
    if wider and best <= cap // 2:
        return min(wider)
    return best


# ---------------- pass 1: BatchNorm1d (train mode) over the full batch ----------------
def _bn_kernel(x_ref, gamma_ref, beta_ref, feat_ref, feat16_ref, *, inv_n, eps):
    x = x_ref[...]                                          # (N, td) f32
    mean = jnp.sum(x, axis=0, keepdims=True) * inv_n        # (1, td)
    ex2 = jnp.sum(x * x, axis=0, keepdims=True) * inv_n     # (1, td)
    var = ex2 - mean * mean                                 # biased variance
    inv_std = lax.rsqrt(var + eps)
    feature = (x - mean) * (inv_std * gamma_ref[...]) + beta_ref[...]
    feat_ref[...] = feature                                 # f32 module output (written once)
    feat16_ref[...] = feature.astype(jnp.bfloat16)          # MXU operand for pass 2


# ---------------- pass 2: bias-free Linear (feature @ W^T), tiled matmul --------------
def _matmul_kernel(f_ref, w_ref, score_ref):
    k = pl.program_id(1)
    prod = jnp.dot(f_ref[...], w_ref[...], preferred_element_type=jnp.float32)

    @pl.when(k == 0)
    def _():
        score_ref[...] = prod            # overwrite: no zero-store, no scratch

    @pl.when(k != 0)
    def _():
        score_ref[...] += prod           # accumulate into the resident output block


def prepack_classifier_weight(w_t):
    """Pad + cast the static (in_dim, class_num) classifier weight (= Linear.weight.T)
    ONCE per model.  bf16 cast happens BEFORE padding -> no padded f32 copy ever exists."""
    d, c = w_t.shape
    return jnp.pad(w_t.astype(jnp.bfloat16),
                   ((0, _round_up(d, LANE) - d), (0, _round_up(c, LANE) - c)))


@functools.partial(jax.jit, static_argnames=("class_num", "eps"))
def bn_classifier_packed(x, gamma, beta, w_packed, *, class_num, eps=1e-5):
    """BNClassifier forward with a prepacked (bf16, lane-padded) classifier weight.

    x: (N, D) float  |  gamma/beta: (D,)  |  w_packed: (D_pad, C_pad) bf16
    returns (feature (N, D) f32, cls_score (N, class_num) f32)
    """
    assert eps > 0.0  # pad-column exactness relies on rsqrt(0 + eps) being finite
    x = x.astype(jnp.float32)
    n, d = x.shape
    d_pad, c_pad = w_packed.shape
    assert d_pad == _round_up(d, LANE) and c_pad >= class_num

    vmem_limit, cap = _tpu_vmem_budget_and_cap()
    budget = (vmem_limit * 3) // 4

    # ---- pass 1: BN over the full batch, tiled along D (each D tile independent) ----
    # Per-step bytes/column: x f32 + feat f32 + feat bf16, double-buffered.
    td_bn = _pick_tile(d_pad, cap, bytes_per_col=2 * (4 + 4 + 2) * n, budget=budget)

    x_p = jnp.pad(x, ((0, 0), (0, d_pad - d)))
    g_p = jnp.pad(jnp.reshape(gamma, (1, -1)).astype(jnp.float32), ((0, 0), (0, d_pad - d)))
    b_p = jnp.pad(jnp.reshape(beta, (1, -1)).astype(jnp.float32), ((0, 0), (0, d_pad - d)))

    feat_p, feat16 = pl.pallas_call(
        functools.partial(_bn_kernel, inv_n=1.0 / n, eps=eps),
        out_shape=(jax.ShapeDtypeStruct((n, d_pad), jnp.float32),
                   jax.ShapeDtypeStruct((n, d_pad), jnp.bfloat16)),
        grid=(d_pad // td_bn,),
        in_specs=[
            pl.BlockSpec((n, td_bn), lambda i: (0, i)),     # x (full batch in block)
            pl.BlockSpec((1, td_bn), lambda i: (0, i)),     # gamma
            pl.BlockSpec((1, td_bn), lambda i: (0, i)),     # beta
        ],
        out_specs=(
            pl.BlockSpec((n, td_bn), lambda i: (0, i)),     # feature f32
            pl.BlockSpec((n, td_bn), lambda i: (0, i)),     # feature bf16
        ),
        compiler_params=pltpu.CompilerParams(
            dimension_semantics=("parallel",),              # clean per-core ownership
            vmem_limit_bytes=vmem_limit,
        ),
    )(x_p, g_p, b_p)

    # ---- pass 2: cls_score = feature_bf16 @ W_packed, grid (C parallel, D reduction) ----
    td_mm = _pick_tile(d_pad, cap, bytes_per_col=2 * 2 * n, budget=budget // 3)
    tc = _pick_tile(c_pad, cap, bytes_per_col=2 * 2 * td_mm + 4 * n, budget=(2 * budget) // 3)

    score_p = pl.pallas_call(
        _matmul_kernel,
        out_shape=jax.ShapeDtypeStruct((n, c_pad), jnp.float32),
        grid=(c_pad // tc, d_pad // td_mm),
        in_specs=[
            pl.BlockSpec((n, td_mm), lambda j, k: (0, k)),   # feature tile (bf16)
            pl.BlockSpec((td_mm, tc), lambda j, k: (k, j)),  # W tile (bf16, prepacked)
        ],
        out_specs=pl.BlockSpec((n, tc), lambda j, k: (0, j)),  # resident over k
        compiler_params=pltpu.CompilerParams(
            dimension_semantics=("parallel", "arbitrary"),
            vmem_limit_bytes=vmem_limit,
        ),
    )(feat16, w_packed)

    return feat_p[:, :d], score_p[:, :class_num]


def bn_classifier(x, gamma, beta, w_t, *, eps=1e-5):
    """Convenience wrapper taking the raw (in_dim, class_num) weight = Linear.weight.T."""
    return bn_classifier_packed(x, gamma, beta, prepack_classifier_weight(w_t),
                                class_num=w_t.shape[1], eps=eps)


def init_params(key, in_dim, class_num):
    # weights_init_kaiming on BatchNorm1d: weight <- 1.0, bias <- 0.0 (bias frozen).
    gamma = jnp.ones((in_dim,), dtype=jnp.float32)
    beta = jnp.zeros((in_dim,), dtype=jnp.float32)
    # weights_init_classifier on Linear: weight ~ Normal(0, std=0.001), no bias.
    w = 0.001 * jax.random.normal(key, (class_num, in_dim), dtype=jnp.float32)
    return gamma, beta, w


if __name__ == "__main__":
    key = jax.random.PRNGKey(0)
    k_x, k_w = jax.random.split(key)

    batch, in_dim, class_num = 8, 32, 16
    x = jax.random.normal(k_x, (batch, in_dim), dtype=jnp.float32)
    gamma, beta, w = init_params(k_w, in_dim, class_num)

    # Static per-model: pack the classifier weight once (bf16 cast BEFORE padding).
    w_packed = prepack_classifier_weight(w.T)

    feature, cls_score = bn_classifier_packed(x, gamma, beta, w_packed,
                                              class_num=class_num)
    jax.block_until_ready((feature, cls_score))

    # Plain-JAX reference (PyTorch BatchNorm1d train-mode semantics + bias-free Linear).
    mean = jnp.mean(x, axis=0, keepdims=True)
    var = jnp.mean((x - mean) ** 2, axis=0, keepdims=True)
    feat_ref = (x - mean) / jnp.sqrt(var + 1e-5) * gamma + beta
    score_ref = feat_ref @ w.T

    assert feature.shape == (batch, in_dim) and cls_score.shape == (batch, class_num)
    assert jnp.allclose(feature, feat_ref, atol=1e-4, rtol=1e-4)
    # Logits go through a bf16 MXU path (f32 accumulation) -> looser tolerance.
    assert jnp.allclose(cls_score, score_ref, atol=1e-3, rtol=2e-2)

    print("KERNEL_OK")
</pallas_src>

<mosaic_0001>
module attributes {stable_mosaic.version = 11 : i64} {
  func.func @_bn_kernel(%arg0: i32, %arg1: memref<8x128xf32, #tpu.memory_space<vmem>>, %arg2: memref<1x128xf32, #tpu.memory_space<vmem>>, %arg3: memref<1x128xf32, #tpu.memory_space<vmem>>, %arg4: memref<8x128xf32, #tpu.memory_space<vmem>>, %arg5: memref<8x128xbf16, #tpu.memory_space<vmem>>) attributes {dimension_semantics = [#tpu.dimension_semantics<parallel>], iteration_bounds = array<i64: 1>, scalar_prefetch = 0 : i64, scratch_operands = 0 : i64, tpu.core_type = #tpu.core_type<tc>, window_params = [{transform_indices = @transform_0, window_bounds = array<i64: 8, 128>}, {transform_indices = @transform_1, window_bounds = array<i64: 1, 128>}, {transform_indices = @transform_2, window_bounds = array<i64: 1, 128>}, {transform_indices = @transform_3, window_bounds = array<i64: 8, 128>}, {transform_indices = @transform_4, window_bounds = array<i64: 8, 128>}]} {
    %c0 = arith.constant 0 : index
    %c0_0 = arith.constant 0 : index
    %0 = vector.load %arg1[%c0, %c0_0] : memref<8x128xf32, #tpu.memory_space<vmem>>, vector<8x128xf32>
    %cst = arith.constant dense<0.000000e+00> : vector<128xf32>
    %1 = vector.multi_reduction <add>, %0, %cst [0] : vector<8x128xf32> to vector<128xf32>
    %2 = vector.shape_cast %1 : vector<128xf32> to vector<1x128xf32>
    %cst_1 = arith.constant 1.250000e-01 : f32
    %3 = vector.broadcast %cst_1 : f32 to vector<1x128xf32>
    %4 = arith.mulf %2, %3 : vector<1x128xf32>
    %5 = arith.mulf %0, %0 : vector<8x128xf32>
    %cst_2 = arith.constant dense<0.000000e+00> : vector<128xf32>
    %6 = vector.multi_reduction <add>, %5, %cst_2 [0] : vector<8x128xf32> to vector<128xf32>
    %7 = vector.shape_cast %6 : vector<128xf32> to vector<1x128xf32>
    %cst_3 = arith.constant 1.250000e-01 : f32
    %8 = vector.broadcast %cst_3 : f32 to vector<1x128xf32>
    %9 = arith.mulf %7, %8 : vector<1x128xf32>
    %10 = arith.mulf %4, %4 : vector<1x128xf32>
    %11 = arith.subf %9, %10 : vector<1x128xf32>
    %cst_4 = arith.constant 9.99999974E-6 : f32
    %12 = vector.broadcast %cst_4 : f32 to vector<1x128xf32>
    %13 = arith.addf %11, %12 : vector<1x128xf32>
    %14 = math.rsqrt %13 : vector<1x128xf32>
    %15 = vector.broadcast %4 : vector<1x128xf32> to vector<8x128xf32>
    %16 = arith.subf %0, %15 : vector<8x128xf32>
    %c0_5 = arith.constant 0 : index
    %c0_6 = arith.constant 0 : index
    %17 = vector.load %arg2[%c0_5, %c0_6] : memref<1x128xf32, #tpu.memory_space<vmem>>, vector<1x128xf32>
    %18 = arith.mulf %14, %17 : vector<1x128xf32>
    %19 = vector.broadcast %18 : vector<1x128xf32> to vector<8x128xf32>
    %20 = arith.mulf %16, %19 : vector<8x128xf32>
    %c0_7 = arith.constant 0 : index
    %c0_8 = arith.constant 0 : index
    %21 = vector.load %arg3[%c0_7, %c0_8] : memref<1x128xf32, #tpu.memory_space<vmem>>, vector<1x128xf32>
    %22 = vector.broadcast %21 : vector<1x128xf32> to vector<8x128xf32>
    %23 = arith.addf %20, %22 : vector<8x128xf32>
    %c0_9 = arith.constant 0 : index
    %c0_10 = arith.constant 0 : index
    %24 = vector.load %arg4[%c0_9, %c0_10] : memref<8x128xf32, #tpu.memory_space<vmem>>, vector<8x128xf32>
    tpu.vector_store %arg4[%c0_9, %c0_10], %23 {strides = array<i32>} : memref<8x128xf32, #tpu.memory_space<vmem>>, vector<8x128xf32>,
    %25 = arith.truncf %23 : vector<8x128xf32> to vector<8x128xbf16>
    %c0_11 = arith.constant 0 : index
    %c0_12 = arith.constant 0 : index
    %26 = vector.load %arg5[%c0_11, %c0_12] : memref<8x128xbf16, #tpu.memory_space<vmem>>, vector<8x128xbf16>
    tpu.vector_store %arg5[%c0_11, %c0_12], %25 {strides = array<i32>} : memref<8x128xbf16, #tpu.memory_space<vmem>>, vector<8x128xbf16>,
    return
  }
  func.func @transform_0(%arg0: i32) -> (i32, i32) {
    %c0_i32 = arith.constant 0 : i32
    %c0_i32_0 = arith.constant 0 : i32
    return %c0_i32, %arg0 : i32, i32
  }
  func.func @transform_1(%arg0: i32) -> (i32, i32) {
    %c0_i32 = arith.constant 0 : i32
    %c0_i32_0 = arith.constant 0 : i32
    return %c0_i32, %arg0 : i32, i32
  }
  func.func @transform_2(%arg0: i32) -> (i32, i32) {
    %c0_i32 = arith.constant 0 : i32
    %c0_i32_0 = arith.constant 0 : i32
    return %c0_i32, %arg0 : i32, i32
  }
  func.func @transform_3(%arg0: i32) -> (i32, i32) {
    %c0_i32 = arith.constant 0 : i32
    %c0_i32_0 = arith.constant 0 : i32
    return %c0_i32, %arg0 : i32, i32
  }
  func.func @transform_4(%arg0: i32) -> (i32, i32) {
    %c0_i32 = arith.constant 0 : i32
    %c0_i32_0 = arith.constant 0 : i32
    return %c0_i32, %arg0 : i32, i32
  }
}

module attributes {stable_mosaic.version = 11 : i64} {
  func.func @_matmul_kernel(%arg0: i32, %arg1: i32, %arg2: memref<8x128xbf16, #tpu.memory_space<vmem>>, %arg3: memref<128x128xbf16, #tpu.memory_space<vmem>>, %arg4: memref<8x128xf32, #tpu.memory_space<vmem>>) attributes {dimension_semantics = [#tpu.dimension_semantics<parallel>, #tpu.dimension_semantics<arbitrary>], iteration_bounds = array<i64: 1, 1>, scalar_prefetch = 0 : i64, scratch_operands = 0 : i64, tpu.core_type = #tpu.core_type<tc>, window_params = [{transform_indices = @transform_0, window_bounds = array<i64: 8, 128>}, {transform_indices = @transform_1, window_bounds = array<i64: 128, 128>}, {transform_indices = @transform_2, window_bounds = array<i64: 8, 128>}]} {
    %c0 = arith.constant 0 : index
    %c0_0 = arith.constant 0 : index
    %0 = vector.load %arg2[%c0, %c0_0] : memref<8x128xbf16, #tpu.memory_space<vmem>>, vector<8x128xbf16>
    %c0_1 = arith.constant 0 : index
    %c0_2 = arith.constant 0 : index
    %1 = vector.load %arg3[%c0_1, %c0_2] : memref<128x128xbf16, #tpu.memory_space<vmem>>, vector<128x128xbf16>
    %cst = arith.constant dense<0.000000e+00> : vector<8x128xf32>
    %2 = tpu.matmul %0, %1, %cst {dimension_numbers = #tpu.dot_dimension_numbers<[1], [0], [0], [1], [0, 0, 1, 1], [], []>} : vector<8x128xbf16>, vector<128x128xbf16>, vector<8x128xf32> -> vector<8x128xf32>
    %c0_i32 = arith.constant 0 : i32
    %3 = arith.cmpi eq, %arg1, %c0_i32 : i32
    %4 = arith.extui %3 : i1 to i32
    %c0_i32_3 = arith.constant 0 : i32
    %5 = arith.cmpi ne, %4, %c0_i32_3 : i32
    scf.if %5 {
      %c0_6 = arith.constant 0 : index
      %c0_7 = arith.constant 0 : index
      %9 = vector.load %arg4[%c0_6, %c0_7] : memref<8x128xf32, #tpu.memory_space<vmem>>, vector<8x128xf32>
      tpu.vector_store %arg4[%c0_6, %c0_7], %2 {strides = array<i32>} : memref<8x128xf32, #tpu.memory_space<vmem>>, vector<8x128xf32>,
    } else {
    }
    %c0_i32_4 = arith.constant 0 : i32
    %6 = arith.cmpi ne, %arg1, %c0_i32_4 : i32
    %7 = arith.extui %6 : i1 to i32
    %c0_i32_5 = arith.constant 0 : i32
    %8 = arith.cmpi ne, %7, %c0_i32_5 : i32
    scf.if %8 {
      %c0_6 = arith.constant 0 : index
      %c0_7 = arith.constant 0 : index
      %9 = vector.load %arg4[%c0_6, %c0_7] : memref<8x128xf32, #tpu.memory_space<vmem>>, vector<8x128xf32>
      %10 = arith.addf %9, %2 : vector<8x128xf32>
      %c0_8 = arith.constant 0 : index
      %c0_9 = arith.constant 0 : index
      %11 = vector.load %arg4[%c0_8, %c0_9] : memref<8x128xf32, #tpu.memory_space<vmem>>, vector<8x128xf32>
      tpu.vector_store %arg4[%c0_8, %c0_9], %10 {strides = array<i32>} : memref<8x128xf32, #tpu.memory_space<vmem>>, vector<8x128xf32>,
    } else {
    }
    return
  }
  func.func @transform_0(%arg0: i32, %arg1: i32) -> (i32, i32) {
    %c0_i32 = arith.constant 0 : i32
    %c0_i32_0 = arith.constant 0 : i32
    return %c0_i32, %arg1 : i32, i32
  }
  func.func @transform_1(%arg0: i32, %arg1: i32) -> (i32, i32) {
    %c0_i32 = arith.constant 0 : i32
    return %arg1, %arg0 : i32, i32
  }
  func.func @transform_2(%arg0: i32, %arg1: i32) -> (i32, i32) {
    %c0_i32 = arith.constant 0 : i32
    %c0_i32_0 = arith.constant 0 : i32
    return %c0_i32, %arg0 : i32, i32
  }
}

</mosaic_0001>

<llo_original>
// kernel: bn_classifier_packed.2
$region0: #{bn_classifier_packed.2}
  #allocation0 [shape = 'u32[]', space=smem, size = 0x4, offset = 0x4, fixed_abs, tag = 'smem constant byte address 0x4 - core index']
  #allocation1 [shape = 'u32[144,128]{1,0:T(1,128)}', space=vmem, size = 0x12000, scoped, tag = 'internal scratch']
  %s0 = inlined_call_operand.vmem [shape: f32[8,128], index: 0, kind: input, shape index: {}]
  %s1 = inlined_call_operand.vmem [shape: f32[1,128], index: 1, kind: input, shape index: {}]
  %s2 = inlined_call_operand.vmem [shape: f32[1,128], index: 2, kind: input, shape index: {}]
  %s3 = inlined_call_operand.hbm [shape: f32[8,128], index: 3, kind: output, shape index: {0}]
  %s4 = inlined_call_operand.vmem [shape: bf16[8,128], index: 4, kind: output, shape index: {1}]
  %5 = xla_tuple %s3, %s4
  %s6 = sld [smem:[#allocation0]]
  $region30: #{bn_classifier_packed.2} parent=0
    _
  %s8 = ssub.s32 1, %s6
  %s9 = scalar_select 0, %s8, %s6
  $region1: #{bn_classifier_packed.2} parent=0
    #allocation2 [shape = 'u8[4096]{0}', space=vmem, size = 0x1000, scoped, tag = 'output window, operand 0, single buffered']
    #allocation3 [shape = 's32[1]{0}', space=sflag, size = 0x4, scoped, tag = 'scoped memory for bn_classifier_packed.2']
    %10 = vsyncpa [#allocation3], 0
    // Predicated region
    $region2: #{bn_classifier_packed.2} parent=1 // pred_check
      _
    $region3: #{bn_classifier_packed.2} parent=1 // pred_check_branch
      %12 = sbr.rel (0) target = $region5
    $region4: #{bn_classifier_packed.2} parent=1 // pred_region
      _
    $region5: #{bn_classifier_packed.2} parent=1 // pred_fallthru
      _
    // Predicated region
    $region6: #{bn_classifier_packed.2} parent=1 // pred_check
      _
    $region7: #{bn_classifier_packed.2} parent=1 // pred_check_branch
      %14 = sbr.rel (0) target = $region9
    $region8: #{bn_classifier_packed.2} parent=1 // pred_region
      _
    $region9: #{bn_classifier_packed.2} parent=1 // pred_fallthru
      _
    // Predicated region
    $region10: #{bn_classifier_packed.2} parent=1 // pred_check
      _
    $region11: #{bn_classifier_packed.2} parent=1 // pred_check_branch
      %16 = sbr.rel (0) target = $region13
    $region12: #{bn_classifier_packed.2} parent=1 // pred_region
      _
    $region13: #{bn_classifier_packed.2} parent=1 // pred_fallthru
      _
    %v17 = vld [vmem:[%s0] sm:$0xff]
    %v18 = vrot.slane %v17, 4
    %v19 = vadd.f32 %v17, %v18
    %v20 = vrot.slane %v19, 2
    %v21 = vadd.f32 %v19, %v20
    %v22 = vrot.slane %v21, 1
    %v23 = vadd.f32 %v21, %v22
    %v24 = vmul.f32 %v23, 0.125
    %v25 = vmul.f32 %v17, %v17
    %v26 = vrot.slane %v25, 4
    %v27 = vadd.f32 %v25, %v26
    %v28 = vrot.slane %v27, 2
    %v29 = vadd.f32 %v27, %v28
    %v30 = vrot.slane %v29, 1
    %v31 = vadd.f32 %v29, %v30
    %v32 = vmul.f32 %v31, 0.125
    %v33 = vmul.f32 %v24, %v24
    %v34 = vsub.f32 %v32, %v33
    %v35 = vadd.f32 %v34, 1e-05
    %v36 = vrsqrt.pop %v35
    %v37 = vsub.f32 %v17, %v24
    %v38 = vld [vmem:[%s1] sm:$0x1]
    %v39 = vmul.f32 %v36, %v38
    %v40 = vlaneseq
    %v41 = vshrl.u32 %v40, 7
    %v42 = vsub.s32 0, %v41
    %v43 = vrot.slane %v39, %v42
    %v44 = vmul.f32 %v37, %v43
    %v45 = vld [vmem:[%s2] sm:$0x1]
    %v47 = vlaneseq
    %v48 = vshrl.u32 %v47, 7
    %v49 = vsub.s32 0, %v48
    %v50 = vrot.slane %v45, %v49
    %v52 = vadd.f32 %v44, %v50
    %53 = vst [vmem:[#allocation2] sm:$0xff] %v52
    %v54 = vpack.c.bf16 %v52, %v52
    %55 = vst [vmem:[%s4] sm:$0xf] %v54
    // Predicated region
    $region14: #{bn_classifier_packed.2} parent=1 // pred_check
      _
    $region15: #{bn_classifier_packed.2} parent=1 // pred_check_branch
      %57 = sbr.rel (0) target = $region17
    $region16: #{bn_classifier_packed.2} parent=1 // pred_region
      %s59 = ssub.s32 128, 128
      %60 = vsyncadd [#allocation3], %s59
      %s62 = sshll.u32 [#allocation2], 4
      %s63 = int_to_ptr.vmem [resolvable:$true] %s62
      %65 = dma.vmem_to_hbm [thread:$0]  %s63, 128, %s3, [#allocation3]
    $region17: #{bn_classifier_packed.2} parent=1 // pred_fallthru
      _
    // Predicated region
    $region18: #{bn_classifier_packed.2} parent=1 // pred_check
      _
    $region19: #{bn_classifier_packed.2} parent=1 // pred_check_branch
      %67 = sbr.rel (0) target = $region21
    $region20: #{bn_classifier_packed.2} parent=1 // pred_region
      _
    $region21: #{bn_classifier_packed.2} parent=1 // pred_fallthru
      _
    // Predicated region
    $region22: #{bn_classifier_packed.2} parent=1 // pred_check
      _
    $region23: #{bn_classifier_packed.2} parent=1 // pred_check_branch
      %69 = sbr.rel (0) target = $region25
    $region24: #{bn_classifier_packed.2} parent=1 // pred_region
      %70 = dma.done [#allocation3], 128
    $region25: #{bn_classifier_packed.2} parent=1 // pred_fallthru
      _
    // Predicated region
    $region26: #{bn_classifier_packed.2} parent=1 // pred_check
      _
    $region27: #{bn_classifier_packed.2} parent=1 // pred_check_branch
      %72 = sbr.rel (0) target = $region29
    $region28: #{bn_classifier_packed.2} parent=1 // pred_region
      _
    $region29: #{bn_classifier_packed.2} parent=1 // pred_fallthru
      _
    %73 = vsyncpa [#allocation3], 1

// kernel: bn_classifier_packed.3
$region0: #{bn_classifier_packed.3}
  #allocation0 [shape = 'u32[]', space=smem, size = 0x4, offset = 0x4, fixed_abs, tag = 'smem constant byte address 0x4 - core index']
  #allocation1 [shape = 'u32[144,128]{1,0:T(1,128)}', space=vmem, size = 0x12000, scoped, tag = 'internal scratch']
  %s0 = inlined_call_operand.vmem [shape: bf16[8,128], index: 0, kind: input, shape index: {}]
  %s1 = inlined_call_operand.vmem [shape: bf16[128,128], index: 1, kind: input, shape index: {}]
  %s2 = inlined_call_operand.hbm [shape: f32[8,128], index: 2, kind: output, shape index: {}]
  %s3 = sld [smem:[#allocation0]]
  $region26: #{bn_classifier_packed.3} parent=0
    _
  %s5 = ssub.s32 1, %s3
  %s6 = scalar_select 0, %s5, %s3
  $region1: #{bn_classifier_packed.3} parent=0
    #allocation2 [shape = 'u8[4096]{0}', space=vmem, size = 0x1000, scoped, tag = 'output window, operand 0, single buffered']
    #allocation3 [shape = 's32[1]{0}', space=sflag, size = 0x4, scoped, tag = 'scoped memory for bn_classifier_packed.3']
    %7 = vsyncpa [#allocation3], 0
    // Predicated region
    $region2: #{bn_classifier_packed.3} parent=1 // pred_check
      _
    $region3: #{bn_classifier_packed.3} parent=1 // pred_check_branch
      %9 = sbr.rel (0) target = $region5
    $region4: #{bn_classifier_packed.3} parent=1 // pred_region
      _
    $region5: #{bn_classifier_packed.3} parent=1 // pred_fallthru
      _
    // Predicated region
    $region6: #{bn_classifier_packed.3} parent=1 // pred_check
      _
    $region7: #{bn_classifier_packed.3} parent=1 // pred_check_branch
      %11 = sbr.rel (0) target = $region9
    $region8: #{bn_classifier_packed.3} parent=1 // pred_region
      _
    $region9: #{bn_classifier_packed.3} parent=1 // pred_fallthru
      _
    %v13 = vld [vmem:[%s0] sm:$0xf]
    %v14 = vld [vmem:[%s1] sm:$0xf]
    %v15 = vld [vmem:[%s1 + $0x4] sm:$0xf]
    %v16 = vld [vmem:[%s1 + $0x8] sm:$0xf]
    %v17 = vld [vmem:[%s1 + $0xc] sm:$0xf]
    %v18 = vld [vmem:[%s1 + $0x10] sm:$0xf]
    %v19 = vld [vmem:[%s1 + $0x14] sm:$0xf]
    %v20 = vld [vmem:[%s1 + $0x18] sm:$0xf]
    %v21 = vld [vmem:[%s1 + $0x1c] sm:$0xf]
    %v22 = vld [vmem:[%s1 + $0x20] sm:$0xf]
    %v23 = vld [vmem:[%s1 + $0x24] sm:$0xf]
    %v24 = vld [vmem:[%s1 + $0x28] sm:$0xf]
    %v25 = vld [vmem:[%s1 + $0x2c] sm:$0xf]
    %v26 = vld [vmem:[%s1 + $0x30] sm:$0xf]
    %v27 = vld [vmem:[%s1 + $0x34] sm:$0xf]
    %v28 = vld [vmem:[%s1 + $0x38] sm:$0xf]
    %v29 = vld [vmem:[%s1 + $0x3c] sm:$0xf]
    %v46 = vunpack.c.l.b16 %v14
    %v47 = vunpack.c.l.b16 %v15
    %v48 = vunpack.c.l.b16 %v16
    %v49 = vunpack.c.l.b16 %v17
    %v50 = vunpack.c.l.b16 %v18
    %v51 = vunpack.c.l.b16 %v19
    %v52 = vunpack.c.l.b16 %v20
    %v53 = vunpack.c.l.b16 %v21
    %v54 = vunpack.c.l.b16 %v22
    %v55 = vunpack.c.l.b16 %v23
    %v56 = vunpack.c.l.b16 %v24
    %v57 = vunpack.c.l.b16 %v25
    %v58 = vunpack.c.l.b16 %v26
    %v59 = vunpack.c.l.b16 %v27
    %v60 = vunpack.c.l.b16 %v28
    %v61 = vunpack.c.l.b16 %v29
    %v62 = vpack.c.b16 %v47, %v46
    %v63 = vpack.c.b16 %v49, %v48
    %v64 = vpack.c.b16 %v51, %v50
    %v65 = vpack.c.b16 %v53, %v52
    %v66 = vpack.c.b16 %v55, %v54
    %v67 = vpack.c.b16 %v57, %v56
    %v68 = vpack.c.b16 %v59, %v58
    %v69 = vpack.c.b16 %v61, %v60
    %78 = vmatprep.subr.bf16.mxu0 0
    %79 = vmatpush1.bf16.msra.mxu0 %v62
    %80 = vmatprep.subr.bf16.mxu0 0
    %81 = vmatpush1.bf16.msra.mxu0 %v63
    %82 = vmatprep.subr.bf16.mxu0 0
    %83 = vmatpush1.bf16.msra.mxu0 %v64
    %84 = vmatprep.subr.bf16.mxu0 0
    %85 = vmatpush1.bf16.msra.mxu0 %v65
    %86 = vmatprep.subr.bf16.mxu0 0
    %87 = vmatpush1.bf16.msra.mxu0 %v66
    %88 = vmatprep.subr.bf16.mxu0 0
    %89 = vmatpush1.bf16.msra.mxu0 %v67
    %90 = vmatprep.subr.bf16.mxu0 0
    %91 = vmatpush1.bf16.msra.mxu0 %v68
    %92 = vmatprep.subr.bf16.mxu0 0
    %93 = vmatpush1.bf16.msra.mxu0 %v69
    %94 = vmatprep.subr.bf16.mxu0 0
    %95 = vmatpush1.bf16.msra.mxu0 0
    %96 = vmatprep.subr.bf16.mxu0 0
    %97 = vmatpush1.bf16.msra.mxu0 0
    %98 = vmatprep.subr.bf16.mxu0 0
    %99 = vmatpush1.bf16.msra.mxu0 0
    %100 = vmatprep.subr.bf16.mxu0 0
    %101 = vmatpush1.bf16.msra.mxu0 0
    %102 = vmatprep.subr.bf16.mxu0 0
    %103 = vmatpush1.bf16.msra.mxu0 0
    %104 = vmatprep.subr.bf16.mxu0 0
    %105 = vmatpush1.bf16.msra.mxu0 0
    %106 = vmatprep.subr.bf16.mxu0 0
    %107 = vmatpush1.bf16.msra.mxu0 0
    %108 = vmatprep.subr.bf16.mxu0 0
    %109 = vmatpush1.bf16.msra.mxu0 0
    %110 = vmatprep.mubr.bf16.mxu0 0
    %111 = vmatmul.mubr.bf16.gmra.mrb[0].mxu0 %v13
    %v112 = vpop.f32.mrb[0].mxu0
    %v113 = vadd.f32 0.0, %v112
    %v114 = vpop.f32.mrb[0].mxu0
    %v115 = vpop.f32.mrb[0].mxu0
    %v116 = vpop.f32.mrb[0].mxu0
    %117 = vdwg.mxu0
    %p118 = scmp.eq.s32.totalorder 0, 0
    // Predicated region
    $region10: #{bn_classifier_packed.3} parent=1 // pred_check
      %p119 = pneg %p118
    $region11: #{bn_classifier_packed.3} parent=1 // pred_check_branch
      %121 = sbr.rel (%p119) target = $region13
    $region12: #{bn_classifier_packed.3} parent=1 // pred_region
      %122 = vst [vmem:[#allocation2] sm:$0xff] %v113
    $region13: #{bn_classifier_packed.3} parent=1 // pred_fallthru
      _
    %p123 = scmp.ne.s32.totalorder 0, 0
    // Predicated region
    $region14: #{bn_classifier_packed.3} parent=1 // pred_check
      %p124 = pneg %p123
    $region15: #{bn_classifier_packed.3} parent=1 // pred_check_branch
      %126 = sbr.rel (%p124) target = $region17
    $region16: #{bn_classifier_packed.3} parent=1 // pred_region
      %v127 = vld [vmem:[#allocation2] sm:$0xff]
      %v128 = vadd.f32 %v127, %v113
      %129 = vst [vmem:[#allocation2] sm:$0xff] %v128
    $region17: #{bn_classifier_packed.3} parent=1 // pred_fallthru
      _
    // Predicated region
    $region18: #{bn_classifier_packed.3} parent=1 // pred_check
      _
    $region19: #{bn_classifier_packed.3} parent=1 // pred_check_branch
      %131 = sbr.rel (0) target = $region21
    $region20: #{bn_classifier_packed.3} parent=1 // pred_region
      %s133 = ssub.s32 128, 128
      %134 = vsyncadd [#allocation3], %s133
      %s136 = sshll.u32 [#allocation2], 4
      %s137 = int_to_ptr.vmem [resolvable:$true] %s136
      %139 = dma.vmem_to_hbm [thread:$0]  %s137, 128, %s2, [#allocation3]
    $region21: #{bn_classifier_packed.3} parent=1 // pred_fallthru
      _
    // Predicated region
    $region22: #{bn_classifier_packed.3} parent=1 // pred_check
      _
    $region23: #{bn_classifier_packed.3} parent=1 // pred_check_branch
      %141 = sbr.rel (0) target = $region25
    $region24: #{bn_classifier_packed.3} parent=1 // pred_region
      %142 = dma.done [#allocation3], 128
    $region25: #{bn_classifier_packed.3} parent=1 // pred_fallthru
      _
    %143 = vsyncpa [#allocation3], 1

</llo_original>
